<compile_context>
chip_gen: v6e
topology: v6e:2x2x1
jax: 0.10.0
libtpu: 0.0.40
codegen_flags: <defaults>
</compile_context>

<pallas_src>
import functools

import jax
import jax.numpy as jnp
from jax.experimental import pallas as pl
from jax.experimental.pallas import tpu as pltpu

_EPS = 1e-5
_VMEM_LIMIT = 32 * 1024 * 1024  # fits every generation, incl. v7x (64 MiB/TC)
_MXU_DTYPE = jnp.bfloat16       # MXU inputs only; all elementwise math stays f32


# ----------------------------------------------------------------------------
# Pallas kernels (channel-major: rows = channels, lanes = B*H*W)
# ----------------------------------------------------------------------------
def _conv_bn_relu_kernel(w_ref, p_ref, b_ref, g_ref, beta_ref, o_ref, *, eps):
    """o = relu(batchnorm(W @ P + b)) with per-row (per-channel) batch stats."""
    acc = jnp.dot(w_ref[...], p_ref[...], preferred_element_type=jnp.float32)
    acc = acc + b_ref[...]                                      # (Cout, M) f32
    mean = jnp.mean(acc, axis=1, keepdims=True)                 # per-channel mean
    var = jnp.mean(jnp.square(acc - mean), axis=1, keepdims=True)
    xn = (acc - mean) * jax.lax.rsqrt(var + eps)                # rsqrt -> EUP
    o_ref[...] = jnp.maximum(g_ref[...] * xn + beta_ref[...], 0.0)


def _conv_bn_skip_relu_kernel(w2_ref, p2_ref, b2_ref, g2_ref, beta2_ref,
                              ws_ref, xt_ref, bs_ref, o_ref, *, eps):
    """o = relu(batchnorm(W2 @ P2 + b2) + (Wskip @ X + bskip))."""
    acc = jnp.dot(w2_ref[...], p2_ref[...], preferred_element_type=jnp.float32)
    acc = acc + b2_ref[...]
    mean = jnp.mean(acc, axis=1, keepdims=True)
    var = jnp.mean(jnp.square(acc - mean), axis=1, keepdims=True)
    hn = g2_ref[...] * ((acc - mean) * jax.lax.rsqrt(var + eps)) + beta2_ref[...]
    res = jnp.dot(ws_ref[...], xt_ref[...], preferred_element_type=jnp.float32)
    res = res + bs_ref[...]
    o_ref[...] = jnp.maximum(hn + res, 0.0)


def _full_spec(shape):
    # Full-array block: legal even when dims are not (8,128)-multiples.
    return pl.BlockSpec(shape, lambda i: (0,) * len(shape))


def _conv_bn_relu(w, p, b, g, beta, eps=_EPS):
    cout, k = w.shape
    _, m = p.shape
    cost = pl.CostEstimate(
        flops=int(2 * cout * k * m + 8 * cout * m),
        transcendentals=int(cout),
        bytes_accessed=int(w.size * w.dtype.itemsize + p.size * p.dtype.itemsize
                           + 3 * cout * 4 + cout * m * 4))
    return pl.pallas_call(
        functools.partial(_conv_bn_relu_kernel, eps=eps),
        out_shape=jax.ShapeDtypeStruct((cout, m), jnp.float32),
        grid=(1,),
        in_specs=[_full_spec(w.shape), _full_spec(p.shape), _full_spec(b.shape),
                  _full_spec(g.shape), _full_spec(beta.shape)],
        out_specs=_full_spec((cout, m)),
        compiler_params=pltpu.CompilerParams(
            dimension_semantics=("arbitrary",),
            vmem_limit_bytes=_VMEM_LIMIT),
        cost_estimate=cost,
    )(w, p, b, g, beta)


def _conv_bn_skip_relu(w2, p2, b2, g2, beta2, ws, xt, bs, eps=_EPS):
    cout, k2 = w2.shape
    _, m = p2.shape
    cin = ws.shape[1]
    cost = pl.CostEstimate(
        flops=int(2 * cout * k2 * m + 2 * cout * cin * m + 10 * cout * m),
        transcendentals=int(cout),
        bytes_accessed=int(w2.size * w2.dtype.itemsize + p2.size * p2.dtype.itemsize
                           + ws.size * ws.dtype.itemsize + xt.size * xt.dtype.itemsize
                           + 4 * cout * 4 + cout * m * 4))
    return pl.pallas_call(
        functools.partial(_conv_bn_skip_relu_kernel, eps=eps),
        out_shape=jax.ShapeDtypeStruct((cout, m), jnp.float32),
        grid=(1,),
        in_specs=[_full_spec(w2.shape), _full_spec(p2.shape), _full_spec(b2.shape),
                  _full_spec(g2.shape), _full_spec(beta2.shape),
                  _full_spec(ws.shape), _full_spec(xt.shape), _full_spec(bs.shape)],
        out_specs=_full_spec((cout, m)),
        compiler_params=pltpu.CompilerParams(
            dimension_semantics=("arbitrary",),
            vmem_limit_bytes=_VMEM_LIMIT),
        cost_estimate=cost,
    )(w2, p2, b2, g2, beta2, ws, xt, bs)


# ----------------------------------------------------------------------------
# Glue (im2col in channel-major layout; one transpose in, one transpose out)
# ----------------------------------------------------------------------------
def _im2col_cm(x_cm, kh=3, kw=3, pad=1):
    """x_cm: (C, B, H, W) -> (C*kh*kw, B*H*W); rows ordered (c, kh, kw) to match
    PyTorch's (Cout, Cin, KH, KW) weight flattening."""
    c, b, h, w = x_cm.shape
    xp = jnp.pad(x_cm, ((0, 0), (0, 0), (pad, pad), (pad, pad)))
    taps = [xp[:, :, i:i + h, j:j + w] for i in range(kh) for j in range(kw)]
    p = jnp.stack(taps, axis=1)                  # (C, kh*kw, B, H, W)
    return p.reshape(c * kh * kw, b * h * w)


def resnet_conv_block(params, x, *, eps=_EPS):
    """Forward of ResNetConvBlock.  x: NCHW float32; returns NCHW float32."""
    b, cin, h, w = x.shape
    cout = params["conv1_w"].shape[0]
    m = b * h * w

    x_cm = x.transpose(1, 0, 2, 3)                                  # (Cin,B,H,W)
    p1 = _im2col_cm(x_cm).astype(_MXU_DTYPE)                        # (Cin*9, M)
    w1 = params["conv1_w"].reshape(cout, cin * 9).astype(_MXU_DTYPE)

    h1 = _conv_bn_relu(w1, p1,
                       params["conv1_b"][:, None],
                       params["bn1_g"][:, None],
                       params["bn1_b"][:, None], eps)               # (Cout, M) f32

    p2 = _im2col_cm(h1.reshape(cout, b, h, w)).astype(_MXU_DTYPE)   # (Cout*9, M)
    w2 = params["conv2_w"].reshape(cout, cout * 9).astype(_MXU_DTYPE)
    ws = params["skip_w"].reshape(cout, cin).astype(_MXU_DTYPE)
    xt = x_cm.reshape(cin, m).astype(_MXU_DTYPE)

    out = _conv_bn_skip_relu(w2, p2,
                             params["conv2_b"][:, None],
                             params["bn2_g"][:, None],
                             params["bn2_b"][:, None],
                             ws, xt, params["skip_b"][:, None], eps)
    return out.reshape(cout, b, h, w).transpose(1, 0, 2, 3)         # NCHW


# ----------------------------------------------------------------------------
# Pure-JAX reference (same bf16-input / f32-accumulate convs) for verification
# ----------------------------------------------------------------------------
def resnet_conv_block_ref(params, x, *, eps=_EPS):
    def conv(inp, w, bias, pad):
        out = jax.lax.conv_general_dilated(
            inp.astype(_MXU_DTYPE), w.astype(_MXU_DTYPE),
            window_strides=(1, 1), padding=[(pad, pad), (pad, pad)],
            dimension_numbers=("NCHW", "OIHW", "NCHW"),
            preferred_element_type=jnp.float32)
        return out + bias[None, :, None, None]

    def bn(v, g, bt):
        mean = jnp.mean(v, axis=(0, 2, 3), keepdims=True)
        var = jnp.mean(jnp.square(v - mean), axis=(0, 2, 3), keepdims=True)
        return (g[None, :, None, None] * (v - mean) * jax.lax.rsqrt(var + eps)
                + bt[None, :, None, None])

    h = jax.nn.relu(bn(conv(x, params["conv1_w"], params["conv1_b"], 1),
                       params["bn1_g"], params["bn1_b"]))
    h = bn(conv(h, params["conv2_w"], params["conv2_b"], 1),
           params["bn2_g"], params["bn2_b"])
    r = conv(x, params["skip_w"], params["skip_b"], 0)
    return jax.nn.relu(h + r)


# ----------------------------------------------------------------------------
if __name__ == "__main__":
    B, Cin, Cout, H, W = 2, 4, 8, 16, 16      # x: (2, 4, 16, 16); B*H*W = 512 lanes

    key = jax.random.PRNGKey(0)
    ks = jax.random.split(key, 11)

    def nrm(k, shape, s=0.1):
        return s * jax.random.normal(k, shape, jnp.float32)

    params = dict(
        conv1_w=nrm(ks[0], (Cout, Cin, 3, 3)), conv1_b=nrm(ks[1], (Cout,)),
        bn1_g=1.0 + nrm(ks[2], (Cout,)),       bn1_b=nrm(ks[3], (Cout,)),
        conv2_w=nrm(ks[4], (Cout, Cout, 3, 3)), conv2_b=nrm(ks[5], (Cout,)),
        bn2_g=1.0 + nrm(ks[6], (Cout,)),        bn2_b=nrm(ks[7], (Cout,)),
        skip_w=nrm(ks[8], (Cout, Cin, 1, 1)),   skip_b=nrm(ks[9], (Cout,)),
    )
    x = jax.random.normal(ks[10], (B, Cin, H, W), jnp.float32)

    fwd = jax.jit(resnet_conv_block)
    out = fwd(params, x)
    jax.block_until_ready(out)

    assert out.shape == (B, Cout, H, W)
    assert bool(jnp.all(jnp.isfinite(out)))

    ref = resnet_conv_block_ref(params, x)
    max_diff = float(jnp.max(jnp.abs(out - ref)))
    assert max_diff < 2e-2, f"mismatch vs reference: max |diff| = {max_diff}"

    print("KERNEL_OK")
</pallas_src>

<mosaic_0001>
module attributes {stable_mosaic.version = 11 : i64} {
  func.func @_conv_bn_relu_kernel(%arg0: i32, %arg1: memref<8x36xbf16, #tpu.memory_space<vmem>>, %arg2: memref<36x512xbf16, #tpu.memory_space<vmem>>, %arg3: memref<8x1xf32, #tpu.memory_space<vmem>>, %arg4: memref<8x1xf32, #tpu.memory_space<vmem>>, %arg5: memref<8x1xf32, #tpu.memory_space<vmem>>, %arg6: memref<8x512xf32, #tpu.memory_space<vmem>>) attributes {dimension_semantics = [#tpu.dimension_semantics<arbitrary>], iteration_bounds = array<i64: 1>, scalar_prefetch = 0 : i64, scratch_operands = 0 : i64, tpu.core_type = #tpu.core_type<tc>, window_params = [{pipeline_mode = #tpu.pipeline_mode<synchronous>, transform_indices = @transform_0, window_bounds = array<i64: 8, 36>}, {pipeline_mode = #tpu.pipeline_mode<synchronous>, transform_indices = @transform_1, window_bounds = array<i64: 36, 512>}, {pipeline_mode = #tpu.pipeline_mode<synchronous>, transform_indices = @transform_2, window_bounds = array<i64: 8, 1>}, {pipeline_mode = #tpu.pipeline_mode<synchronous>, transform_indices = @transform_3, window_bounds = array<i64: 8, 1>}, {pipeline_mode = #tpu.pipeline_mode<synchronous>, transform_indices = @transform_4, window_bounds = array<i64: 8, 1>}, {pipeline_mode = #tpu.pipeline_mode<synchronous>, transform_indices = @transform_5, window_bounds = array<i64: 8, 512>}]} {
    %c0 = arith.constant 0 : index
    %c0_0 = arith.constant 0 : index
    %0 = vector.load %arg1[%c0, %c0_0] : memref<8x36xbf16, #tpu.memory_space<vmem>>, vector<8x36xbf16>
    %c0_1 = arith.constant 0 : index
    %c0_2 = arith.constant 0 : index
    %1 = vector.load %arg2[%c0_1, %c0_2] : memref<36x512xbf16, #tpu.memory_space<vmem>>, vector<36x512xbf16>
    %cst = arith.constant dense<0.000000e+00> : vector<8x512xf32>
    %2 = tpu.matmul %0, %1, %cst {dimension_numbers = #tpu.dot_dimension_numbers<[1], [0], [0], [1], [0, 0, 1, 1], [], []>} : vector<8x36xbf16>, vector<36x512xbf16>, vector<8x512xf32> -> vector<8x512xf32>
    %c0_3 = arith.constant 0 : index
    %c0_4 = arith.constant 0 : index
    %3 = vector.load %arg3[%c0_3, %c0_4] : memref<8x1xf32, #tpu.memory_space<vmem>>, vector<8x1xf32>
    %4 = vector.broadcast %3 : vector<8x1xf32> to vector<8x512xf32>
    %5 = arith.addf %2, %4 : vector<8x512xf32>
    %cst_5 = arith.constant dense<0.000000e+00> : vector<8xf32>
    %6 = vector.multi_reduction <add>, %5, %cst_5 [1] : vector<8x512xf32> to vector<8xf32>
    %7 = vector.shape_cast %6 : vector<8xf32> to vector<8x1xf32>
    %cst_6 = arith.constant 5.120000e+02 : f32
    %8 = vector.broadcast %cst_6 : f32 to vector<8x1xf32>
    %9 = arith.divf %7, %8 : vector<8x1xf32>
    %10 = vector.broadcast %9 : vector<8x1xf32> to vector<8x512xf32>
    %11 = arith.subf %5, %10 : vector<8x512xf32>
    %12 = arith.mulf %11, %11 : vector<8x512xf32>
    %cst_7 = arith.constant dense<0.000000e+00> : vector<8xf32>
    %13 = vector.multi_reduction <add>, %12, %cst_7 [1] : vector<8x512xf32> to vector<8xf32>
    %14 = vector.shape_cast %13 : vector<8xf32> to vector<8x1xf32>
    %cst_8 = arith.constant 5.120000e+02 : f32
    %15 = vector.broadcast %cst_8 : f32 to vector<8x1xf32>
    %16 = arith.divf %14, %15 : vector<8x1xf32>
    %17 = vector.broadcast %9 : vector<8x1xf32> to vector<8x512xf32>
    %18 = arith.subf %5, %17 : vector<8x512xf32>
    %cst_9 = arith.constant 9.99999974E-6 : f32
    %19 = vector.broadcast %cst_9 : f32 to vector<8x1xf32>
    %20 = arith.addf %16, %19 : vector<8x1xf32>
    %21 = math.rsqrt %20 : vector<8x1xf32>
    %22 = vector.broadcast %21 : vector<8x1xf32> to vector<8x512xf32>
    %23 = arith.mulf %18, %22 : vector<8x512xf32>
    %c0_10 = arith.constant 0 : index
    %c0_11 = arith.constant 0 : index
    %24 = vector.load %arg4[%c0_10, %c0_11] : memref<8x1xf32, #tpu.memory_space<vmem>>, vector<8x1xf32>
    %25 = vector.broadcast %24 : vector<8x1xf32> to vector<8x512xf32>
    %26 = arith.mulf %25, %23 : vector<8x512xf32>
    %c0_12 = arith.constant 0 : index
    %c0_13 = arith.constant 0 : index
    %27 = vector.load %arg5[%c0_12, %c0_13] : memref<8x1xf32, #tpu.memory_space<vmem>>, vector<8x1xf32>
    %28 = vector.broadcast %27 : vector<8x1xf32> to vector<8x512xf32>
    %29 = arith.addf %26, %28 : vector<8x512xf32>
    %cst_14 = arith.constant 0.000000e+00 : f32
    %30 = vector.broadcast %cst_14 : f32 to vector<8x512xf32>
    %31 = arith.maximumf %29, %30 : vector<8x512xf32>
    %c0_15 = arith.constant 0 : index
    %c0_16 = arith.constant 0 : index
    %32 = vector.load %arg6[%c0_15, %c0_16] : memref<8x512xf32, #tpu.memory_space<vmem>>, vector<8x512xf32>
    tpu.vector_store %arg6[%c0_15, %c0_16], %31 {strides = array<i32>} : memref<8x512xf32, #tpu.memory_space<vmem>>, vector<8x512xf32>,
    return
  }
  func.func @transform_0(%arg0: i32) -> (i32, i32) {
    %c0_i32 = arith.constant 0 : i32
    %c0_i32_0 = arith.constant 0 : i32
    %c0_i32_1 = arith.constant 0 : i32
    return %c0_i32, %c0_i32_0 : i32, i32
  }
  func.func @transform_1(%arg0: i32) -> (i32, i32) {
    %c0_i32 = arith.constant 0 : i32
    %c0_i32_0 = arith.constant 0 : i32
    %c0_i32_1 = arith.constant 0 : i32
    return %c0_i32, %c0_i32_0 : i32, i32
  }
  func.func @transform_2(%arg0: i32) -> (i32, i32) {
    %c0_i32 = arith.constant 0 : i32
    %c0_i32_0 = arith.constant 0 : i32
    %c0_i32_1 = arith.constant 0 : i32
    return %c0_i32, %c0_i32_0 : i32, i32
  }
  func.func @transform_3(%arg0: i32) -> (i32, i32) {
    %c0_i32 = arith.constant 0 : i32
    %c0_i32_0 = arith.constant 0 : i32
    %c0_i32_1 = arith.constant 0 : i32
    return %c0_i32, %c0_i32_0 : i32, i32
  }
  func.func @transform_4(%arg0: i32) -> (i32, i32) {
    %c0_i32 = arith.constant 0 : i32
    %c0_i32_0 = arith.constant 0 : i32
    %c0_i32_1 = arith.constant 0 : i32
    return %c0_i32, %c0_i32_0 : i32, i32
  }
  func.func @transform_5(%arg0: i32) -> (i32, i32) {
    %c0_i32 = arith.constant 0 : i32
    %c0_i32_0 = arith.constant 0 : i32
    %c0_i32_1 = arith.constant 0 : i32
    return %c0_i32, %c0_i32_0 : i32, i32
  }
}

module attributes {stable_mosaic.version = 11 : i64} {
  func.func @_conv_bn_skip_relu_kernel(%arg0: i32, %arg1: memref<8x72xbf16, #tpu.memory_space<vmem>>, %arg2: memref<72x512xbf16, #tpu.memory_space<vmem>>, %arg3: memref<8x1xf32, #tpu.memory_space<vmem>>, %arg4: memref<8x1xf32, #tpu.memory_space<vmem>>, %arg5: memref<8x1xf32, #tpu.memory_space<vmem>>, %arg6: memref<8x4xbf16, #tpu.memory_space<vmem>>, %arg7: memref<4x512xbf16, #tpu.memory_space<vmem>>, %arg8: memref<8x1xf32, #tpu.memory_space<vmem>>, %arg9: memref<8x512xf32, #tpu.memory_space<vmem>>) attributes {dimension_semantics = [#tpu.dimension_semantics<arbitrary>], iteration_bounds = array<i64: 1>, scalar_prefetch = 0 : i64, scratch_operands = 0 : i64, tpu.core_type = #tpu.core_type<tc>, window_params = [{pipeline_mode = #tpu.pipeline_mode<synchronous>, transform_indices = @transform_0, window_bounds = array<i64: 8, 72>}, {pipeline_mode = #tpu.pipeline_mode<synchronous>, transform_indices = @transform_1, window_bounds = array<i64: 72, 512>}, {pipeline_mode = #tpu.pipeline_mode<synchronous>, transform_indices = @transform_2, window_bounds = array<i64: 8, 1>}, {pipeline_mode = #tpu.pipeline_mode<synchronous>, transform_indices = @transform_3, window_bounds = array<i64: 8, 1>}, {pipeline_mode = #tpu.pipeline_mode<synchronous>, transform_indices = @transform_4, window_bounds = array<i64: 8, 1>}, {pipeline_mode = #tpu.pipeline_mode<synchronous>, transform_indices = @transform_5, window_bounds = array<i64: 8, 4>}, {pipeline_mode = #tpu.pipeline_mode<synchronous>, transform_indices = @transform_6, window_bounds = array<i64: 4, 512>}, {pipeline_mode = #tpu.pipeline_mode<synchronous>, transform_indices = @transform_7, window_bounds = array<i64: 8, 1>}, {pipeline_mode = #tpu.pipeline_mode<synchronous>, transform_indices = @transform_8, window_bounds = array<i64: 8, 512>}]} {
    %c0 = arith.constant 0 : index
    %c0_0 = arith.constant 0 : index
    %0 = vector.load %arg1[%c0, %c0_0] : memref<8x72xbf16, #tpu.memory_space<vmem>>, vector<8x72xbf16>
    %c0_1 = arith.constant 0 : index
    %c0_2 = arith.constant 0 : index
    %1 = vector.load %arg2[%c0_1, %c0_2] : memref<72x512xbf16, #tpu.memory_space<vmem>>, vector<72x512xbf16>
    %cst = arith.constant dense<0.000000e+00> : vector<8x512xf32>
    %2 = tpu.matmul %0, %1, %cst {dimension_numbers = #tpu.dot_dimension_numbers<[1], [0], [0], [1], [0, 0, 1, 1], [], []>} : vector<8x72xbf16>, vector<72x512xbf16>, vector<8x512xf32> -> vector<8x512xf32>
    %c0_3 = arith.constant 0 : index
    %c0_4 = arith.constant 0 : index
    %3 = vector.load %arg3[%c0_3, %c0_4] : memref<8x1xf32, #tpu.memory_space<vmem>>, vector<8x1xf32>
    %4 = vector.broadcast %3 : vector<8x1xf32> to vector<8x512xf32>
    %5 = arith.addf %2, %4 : vector<8x512xf32>
    %cst_5 = arith.constant dense<0.000000e+00> : vector<8xf32>
    %6 = vector.multi_reduction <add>, %5, %cst_5 [1] : vector<8x512xf32> to vector<8xf32>
    %7 = vector.shape_cast %6 : vector<8xf32> to vector<8x1xf32>
    %cst_6 = arith.constant 5.120000e+02 : f32
    %8 = vector.broadcast %cst_6 : f32 to vector<8x1xf32>
    %9 = arith.divf %7, %8 : vector<8x1xf32>
    %10 = vector.broadcast %9 : vector<8x1xf32> to vector<8x512xf32>
    %11 = arith.subf %5, %10 : vector<8x512xf32>
    %12 = arith.mulf %11, %11 : vector<8x512xf32>
    %cst_7 = arith.constant dense<0.000000e+00> : vector<8xf32>
    %13 = vector.multi_reduction <add>, %12, %cst_7 [1] : vector<8x512xf32> to vector<8xf32>
    %14 = vector.shape_cast %13 : vector<8xf32> to vector<8x1xf32>
    %cst_8 = arith.constant 5.120000e+02 : f32
    %15 = vector.broadcast %cst_8 : f32 to vector<8x1xf32>
    %16 = arith.divf %14, %15 : vector<8x1xf32>
    %c0_9 = arith.constant 0 : index
    %c0_10 = arith.constant 0 : index
    %17 = vector.load %arg4[%c0_9, %c0_10] : memref<8x1xf32, #tpu.memory_space<vmem>>, vector<8x1xf32>
    %18 = vector.broadcast %9 : vector<8x1xf32> to vector<8x512xf32>
    %19 = arith.subf %5, %18 : vector<8x512xf32>
    %cst_11 = arith.constant 9.99999974E-6 : f32
    %20 = vector.broadcast %cst_11 : f32 to vector<8x1xf32>
    %21 = arith.addf %16, %20 : vector<8x1xf32>
    %22 = math.rsqrt %21 : vector<8x1xf32>
    %23 = vector.broadcast %22 : vector<8x1xf32> to vector<8x512xf32>
    %24 = arith.mulf %19, %23 : vector<8x512xf32>
    %25 = vector.broadcast %17 : vector<8x1xf32> to vector<8x512xf32>
    %26 = arith.mulf %25, %24 : vector<8x512xf32>
    %c0_12 = arith.constant 0 : index
    %c0_13 = arith.constant 0 : index
    %27 = vector.load %arg5[%c0_12, %c0_13] : memref<8x1xf32, #tpu.memory_space<vmem>>, vector<8x1xf32>
    %28 = vector.broadcast %27 : vector<8x1xf32> to vector<8x512xf32>
    %29 = arith.addf %26, %28 : vector<8x512xf32>
    %c0_14 = arith.constant 0 : index
    %c0_15 = arith.constant 0 : index
    %30 = vector.load %arg6[%c0_14, %c0_15] : memref<8x4xbf16, #tpu.memory_space<vmem>>, vector<8x4xbf16>
    %c0_16 = arith.constant 0 : index
    %c0_17 = arith.constant 0 : index
    %31 = vector.load %arg7[%c0_16, %c0_17] : memref<4x512xbf16, #tpu.memory_space<vmem>>, vector<4x512xbf16>
    %cst_18 = arith.constant dense<0.000000e+00> : vector<8x512xf32>
    %32 = tpu.matmul %30, %31, %cst_18 {dimension_numbers = #tpu.dot_dimension_numbers<[1], [0], [0], [1], [0, 0, 1, 1], [], []>} : vector<8x4xbf16>, vector<4x512xbf16>, vector<8x512xf32> -> vector<8x512xf32>
    %c0_19 = arith.constant 0 : index
    %c0_20 = arith.constant 0 : index
    %33 = vector.load %arg8[%c0_19, %c0_20] : memref<8x1xf32, #tpu.memory_space<vmem>>, vector<8x1xf32>
    %34 = vector.broadcast %33 : vector<8x1xf32> to vector<8x512xf32>
    %35 = arith.addf %32, %34 : vector<8x512xf32>
    %36 = arith.addf %29, %35 : vector<8x512xf32>
    %cst_21 = arith.constant 0.000000e+00 : f32
    %37 = vector.broadcast %cst_21 : f32 to vector<8x512xf32>
    %38 = arith.maximumf %36, %37 : vector<8x512xf32>
    %c0_22 = arith.constant 0 : index
    %c0_23 = arith.constant 0 : index
    %39 = vector.load %arg9[%c0_22, %c0_23] : memref<8x512xf32, #tpu.memory_space<vmem>>, vector<8x512xf32>
    tpu.vector_store %arg9[%c0_22, %c0_23], %38 {strides = array<i32>} : memref<8x512xf32, #tpu.memory_space<vmem>>, vector<8x512xf32>,
    return
  }
  func.func @transform_0(%arg0: i32) -> (i32, i32) {
    %c0_i32 = arith.constant 0 : i32
    %c0_i32_0 = arith.constant 0 : i32
    %c0_i32_1 = arith.constant 0 : i32
    return %c0_i32, %c0_i32_0 : i32, i32
  }
  func.func @transform_1(%arg0: i32) -> (i32, i32) {
    %c0_i32 = arith.constant 0 : i32
    %c0_i32_0 = arith.constant 0 : i32
    %c0_i32_1 = arith.constant 0 : i32
    return %c0_i32, %c0_i32_0 : i32, i32
  }
  func.func @transform_2(%arg0: i32) -> (i32, i32) {
    %c0_i32 = arith.constant 0 : i32
    %c0_i32_0 = arith.constant 0 : i32
    %c0_i32_1 = arith.constant 0 : i32
    return %c0_i32, %c0_i32_0 : i32, i32
  }
  func.func @transform_3(%arg0: i32) -> (i32, i32) {
    %c0_i32 = arith.constant 0 : i32
    %c0_i32_0 = arith.constant 0 : i32
    %c0_i32_1 = arith.constant 0 : i32
    return %c0_i32, %c0_i32_0 : i32, i32
  }
  func.func @transform_4(%arg0: i32) -> (i32, i32) {
    %c0_i32 = arith.constant 0 : i32
    %c0_i32_0 = arith.constant 0 : i32
    %c0_i32_1 = arith.constant 0 : i32
    return %c0_i32, %c0_i32_0 : i32, i32
  }
  func.func @transform_5(%arg0: i32) -> (i32, i32) {
    %c0_i32 = arith.constant 0 : i32
    %c0_i32_0 = arith.constant 0 : i32
    %c0_i32_1 = arith.constant 0 : i32
    return %c0_i32, %c0_i32_0 : i32, i32
  }
  func.func @transform_6(%arg0: i32) -> (i32, i32) {
    %c0_i32 = arith.constant 0 : i32
    %c0_i32_0 = arith.constant 0 : i32
    %c0_i32_1 = arith.constant 0 : i32
    return %c0_i32, %c0_i32_0 : i32, i32
  }
  func.func @transform_7(%arg0: i32) -> (i32, i32) {
    %c0_i32 = arith.constant 0 : i32
    %c0_i32_0 = arith.constant 0 : i32
    %c0_i32_1 = arith.constant 0 : i32
    return %c0_i32, %c0_i32_0 : i32, i32
  }
  func.func @transform_8(%arg0: i32) -> (i32, i32) {
    %c0_i32 = arith.constant 0 : i32
    %c0_i32_0 = arith.constant 0 : i32
    %c0_i32_1 = arith.constant 0 : i32
    return %c0_i32, %c0_i32_0 : i32, i32
  }
}

</mosaic_0001>

<llo_original>
// kernel: resnet_conv_block.2
$region0: #{resnet_conv_block.2}
  #allocation0 [shape = 'u32[]', space=smem, size = 0x4, offset = 0x4, fixed_abs, tag = 'smem constant byte address 0x4 - core index']
  #allocation1 [shape = 'u32[144,128]{1,0:T(1,128)}', space=vmem, size = 0x12000, scoped, tag = 'internal scratch']
  %s0 = inlined_call_operand.vmem [shape: bf16[8,36], index: 0, kind: input, shape index: {}]
  %s1 = inlined_call_operand.vmem [shape: bf16[36,512], index: 1, kind: input, shape index: {}]
  %s2 = inlined_call_operand.vmem [shape: f32[8,1], index: 2, kind: input, shape index: {}]
  %s3 = inlined_call_operand.vmem [shape: f32[8,1], index: 3, kind: input, shape index: {}]
  %s4 = inlined_call_operand.vmem [shape: f32[8,1], index: 4, kind: input, shape index: {}]
  %s5 = inlined_call_operand.vmem [shape: f32[8,512], index: 5, kind: output, shape index: {}]
  %s6 = sld [smem:[#allocation0]]
  $region30: #{resnet_conv_block.2} parent=0
    _
  %s8 = ssub.s32 1, %s6
  %s9 = scalar_select 0, %s8, %s6
  // Predicated region
  $region2: #{resnet_conv_block.2} parent=0 // pred_check
    _
  $region3: #{resnet_conv_block.2} parent=0 // pred_check_branch
    %11 = sbr.rel (0) target = $region5
  $region4: #{resnet_conv_block.2} parent=0 // pred_region
    _
  $region5: #{resnet_conv_block.2} parent=0 // pred_fallthru
    _
  // Predicated region
  $region6: #{resnet_conv_block.2} parent=0 // pred_check
    _
  $region7: #{resnet_conv_block.2} parent=0 // pred_check_branch
    %13 = sbr.rel (0) target = $region9
  $region8: #{resnet_conv_block.2} parent=0 // pred_region
    _
  $region9: #{resnet_conv_block.2} parent=0 // pred_fallthru
    _
  // Predicated region
  $region10: #{resnet_conv_block.2} parent=0 // pred_check
    _
  $region11: #{resnet_conv_block.2} parent=0 // pred_check_branch
    %15 = sbr.rel (0) target = $region13
  $region12: #{resnet_conv_block.2} parent=0 // pred_region
    _
  $region13: #{resnet_conv_block.2} parent=0 // pred_fallthru
    _
  // Predicated region
  $region14: #{resnet_conv_block.2} parent=0 // pred_check
    _
  $region15: #{resnet_conv_block.2} parent=0 // pred_check_branch
    %17 = sbr.rel (0) target = $region17
  $region16: #{resnet_conv_block.2} parent=0 // pred_region
    _
  $region17: #{resnet_conv_block.2} parent=0 // pred_fallthru
    _
  // Predicated region
  $region18: #{resnet_conv_block.2} parent=0 // pred_check
    _
  $region19: #{resnet_conv_block.2} parent=0 // pred_check_branch
    %19 = sbr.rel (0) target = $region21
  $region20: #{resnet_conv_block.2} parent=0 // pred_region
    _
  $region21: #{resnet_conv_block.2} parent=0 // pred_fallthru
    _
  %v21 = vld [vmem:[%s0] sm:$0xf]
  %v22 = vld [vmem:[%s1] sm:$0xff]
  %v23 = vld [vmem:[%s1 + $0x8] sm:$0xff]
  %v24 = vld [vmem:[%s1 + $0x10] sm:$0xff]
  %v25 = vld [vmem:[%s1 + $0x18] sm:$0xff]
  %v26 = vld [vmem:[%s1 + $0x20] sm:$0xff]
  %v27 = vld [vmem:[%s1 + $0x28] sm:$0xff]
  %v28 = vld [vmem:[%s1 + $0x30] sm:$0xff]
  %v29 = vld [vmem:[%s1 + $0x38] sm:$0xff]
  %v30 = vld [vmem:[%s1 + $0x40] sm:$0x33]
  %v31 = vld [vmem:[%s1 + $0x48] sm:$0x33]
  %v32 = vld [vmem:[%s2] sm:$0xff]
  %34 = vset.pattern.permute.xlu0 0
  %35 = vperm.xlu0 %34, %v32
  %v36 = vpop.permute.xlu0 %35
  %v48 = vunpack.c.l.b16 %v22
  %v49 = vunpack.c.h.b16 %v22
  %v50 = vunpack.c.l.b16 %v23
  %v51 = vunpack.c.h.b16 %v23
  %v52 = vunpack.c.l.b16 %v24
  %v53 = vunpack.c.h.b16 %v24
  %v54 = vunpack.c.l.b16 %v25
  %v55 = vunpack.c.h.b16 %v25
  %v56 = vunpack.c.l.b16 %v26
  %v57 = vunpack.c.h.b16 %v26
  %v58 = vunpack.c.l.b16 %v27
  %v59 = vunpack.c.h.b16 %v27
  %v60 = vunpack.c.l.b16 %v28
  %v61 = vunpack.c.h.b16 %v28
  %v62 = vunpack.c.l.b16 %v29
  %v63 = vunpack.c.h.b16 %v29
  %v64 = vunpack.c.l.b16 %v30
  %v65 = vunpack.c.h.b16 %v30
  %v66 = vunpack.c.l.b16 %v31
  %v67 = vunpack.c.h.b16 %v31
  %v68 = vpack.c.b16 %v52, %v48
  %v69 = vpack.c.b16 %v53, %v49
  %v70 = vpack.c.b16 %v54, %v50
  %v71 = vpack.c.b16 %v55, %v51
  %v72 = vpack.c.b16 %v60, %v56
  %v73 = vpack.c.b16 %v61, %v57
  %v74 = vpack.c.b16 %v62, %v58
  %v75 = vpack.c.b16 %v63, %v59
  %v76 = vpack.c.b16 %v64, %v64
  %v77 = vpack.c.b16 %v65, %v65
  %v78 = vpack.c.b16 %v66, %v66
  %v79 = vpack.c.b16 %v67, %v67
  %vm88 = vcmask 293888
  %v90 = vsel %vm88, %v21, 0
  %vm92 = vcmask 1041408
  %v94 = vsel %vm92, %v76, 0
  %v97 = vsel %vm92, %v77, 0
  %v100 = vsel %vm92, %v78, 0
  %v103 = vsel %vm92, %v79, 0
  %105 = vmatprep.subr.bf16.mxu0 0
  %106 = vmatpush1.bf16.msra.mxu0 0
  %107 = vmatprep.subr.bf16.mxu0 0
  %108 = vmatpush1.bf16.msra.mxu0 0
  %109 = vmatprep.subr.bf16.mxu0 0
  %110 = vmatpush1.bf16.msra.mxu0 0
  %111 = vmatprep.subr.bf16.mxu0 0
  %112 = vmatpush1.bf16.msra.mxu0 0
  %113 = vmatprep.subr.bf16.mxu0 0
  %114 = vmatpush1.bf16.msra.mxu0 0
  %115 = vmatprep.subr.bf16.mxu0 %v97
  %116 = vmatpush1.bf16.msra.mxu0 %v94
  %117 = vmatprep.subr.bf16.mxu0 %v73
  %118 = vmatpush1.bf16.msra.mxu0 %v72
  %119 = vmatprep.subr.bf16.mxu0 %v69
  %120 = vmatpush1.bf16.msra.mxu0 %v68
  %121 = vmatprep.subr.bf16.mxu0 0
  %122 = vmatpush2.bf16.msra.mxu0 0
  %123 = vmatprep.subr.bf16.mxu0 0
  %124 = vmatpush2.bf16.msra.mxu0 0
  %125 = vmatprep.subr.bf16.mxu0 0
  %126 = vmatpush2.bf16.msra.mxu0 0
  %127 = vmatprep.subr.bf16.mxu0 0
  %128 = vmatpush2.bf16.msra.mxu0 0
  %129 = vmatprep.subr.bf16.mxu0 0
  %130 = vmatpush2.bf16.msra.mxu0 0
  %131 = vmatprep.subr.bf16.mxu0 0
  %132 = vmatpush2.bf16.msra.mxu0 0
  %133 = vmatprep.subr.bf16.mxu0 0
  %134 = vmatpush2.bf16.msra.mxu0 0
  %135 = vmatprep.subr.bf16.mxu0 0
  %136 = vmatpush2.bf16.msra.mxu0 0
  %137 = vmatprep.mubr.bf16.mxu0 0
  %138 = vmatmul.mubr.bf16.gmra.mxu0 %v90
  %v139 = vpop.f32.mrf.mxu0
  %v140 = vadd.f32 %v36, %v139
  %v141 = vpop.f32.mrf.mxu0
  %v142 = vadd.f32 %v36, %v141
  %v143 = vpop.f32.mrf.mxu0
  %v144 = vpop.f32.mrf.mxu0
  %145 = vdwg.mxu0
  %146 = vmatprep.subr.bf16.mxu0 0
  %147 = vmatpush1.bf16.msra.mxu0 0
  %148 = vmatprep.subr.bf16.mxu0 0
  %149 = vmatpush1.bf16.msra.mxu0 0
  %150 = vmatprep.subr.bf16.mxu0 0
  %151 = vmatpush1.bf16.msra.mxu0 0
  %152 = vmatprep.subr.bf16.mxu0 0
  %153 = vmatpush1.bf16.msra.mxu0 0
  %154 = vmatprep.subr.bf16.mxu0 0
  %155 = vmatpush1.bf16.msra.mxu0 0
  %156 = vmatprep.subr.bf16.mxu0 %v103
  %157 = vmatpush1.bf16.msra.mxu0 %v100
  %158 = vmatprep.subr.bf16.mxu0 %v75
  %159 = vmatpush1.bf16.msra.mxu0 %v74
  %160 = vmatprep.subr.bf16.mxu0 %v71
  %161 = vmatpush1.bf16.msra.mxu0 %v70
  %162 = vmatprep.subr.bf16.mxu0 0
  %163 = vmatpush2.bf16.msra.mxu0 0
  %164 = vmatprep.subr.bf16.mxu0 0
  %165 = vmatpush2.bf16.msra.mxu0 0
  %166 = vmatprep.subr.bf16.mxu0 0
  %167 = vmatpush2.bf16.msra.mxu0 0
  %168 = vmatprep.subr.bf16.mxu0 0
  %169 = vmatpush2.bf16.msra.mxu0 0
  %170 = vmatprep.subr.bf16.mxu0 0
  %171 = vmatpush2.bf16.msra.mxu0 0
  %172 = vmatprep.subr.bf16.mxu0 0
  %173 = vmatpush2.bf16.msra.mxu0 0
  %174 = vmatprep.subr.bf16.mxu0 0
  %175 = vmatpush2.bf16.msra.mxu0 0
  %176 = vmatprep.subr.bf16.mxu0 0
  %177 = vmatpush2.bf16.msra.mxu0 0
  %178 = vmatprep.mubr.bf16.mxu0 0
  %179 = vmatmul.mubr.bf16.gmra.mxu0 %v90
  %v180 = vpop.f32.mrf.mxu0
  %v181 = vadd.f32 %v36, %v180
  %v182 = vpop.f32.mrf.mxu0
  %v183 = vadd.f32 %v36, %v182
  %v184 = vpop.f32.mrf.mxu0
  %v185 = vpop.f32.mrf.mxu0
  %186 = vdwg.mxu0
  %v187 = vadd.f32 %v140, %v142
  %v188 = vadd.f32 %v187, %v181
  %v189 = vadd.f32 %v188, %v183
  %190 = vadd.xlane.f32.xlu0 %v189
  %v191 = vpop.xlane.xlu0 %190
  %v192 = vrcp.pop 512.0
  %v193 = vmul.f32 %v191, %v192
  %v194 = vsub.f32 %v140, %v193
  %v195 = vsub.f32 %v142, %v193
  %v196 = vsub.f32 %v181, %v193
  %v197 = vsub.f32 %v183, %v193
  %v198 = vmul.f32 %v194, %v194
  %v199 = vmul.f32 %v195, %v195
  %v200 = vmul.f32 %v196, %v196
  %v201 = vmul.f32 %v197, %v197
  %v202 = vadd.f32 %v198, %v199
  %v203 = vadd.f32 %v202, %v200
  %v204 = vadd.f32 %v203, %v201
  %205 = vadd.xlane.f32.xlu0 %v204
  %v206 = vpop.xlane.xlu0 %205
  %v207 = vmul.f32 %v206, %v192
  %v208 = vadd.f32 %v207, 1e-05
  %v209 = vrsqrt.pop %v208
  %v210 = vmul.f32 %v194, %v209
  %v211 = vmul.f32 %v195, %v209
  %v212 = vmul.f32 %v196, %v209
  %v213 = vmul.f32 %v197, %v209
  %v214 = vld [vmem:[%s3] sm:$0xff]
  %216 = vset.pattern.permute.xlu0 0
  %217 = vperm.xlu0 %216, %v214
  %v218 = vpop.permute.xlu0 %217
  %v220 = vmul.f32 %v218, %v210
  %v221 = vmul.f32 %v218, %v211
  %v222 = vmul.f32 %v218, %v212
  %v223 = vmul.f32 %v218, %v213
  %v224 = vld [vmem:[%s4] sm:$0xff]
  %226 = vset.pattern.permute.xlu0 0
  %227 = vperm.xlu0 %226, %v224
  %v228 = vpop.permute.xlu0 %227
  %v230 = vadd.f32 %v220, %v228
  %v231 = vadd.f32 %v221, %v228
  %v232 = vadd.f32 %v222, %v228
  %v233 = vadd.f32 %v223, %v228
  %v234 = vmax.f32 %v230, 0.0
  %v235 = vmax.f32 %v231, 0.0
  %v236 = vmax.f32 %v232, 0.0
  %v237 = vmax.f32 %v233, 0.0
  %238 = vst [vmem:[%s5] sm:$0xff] %v234
  %239 = vst [vmem:[%s5 + $0x8] sm:$0xff] %v235
  %240 = vst [vmem:[%s5 + $0x10] sm:$0xff] %v236
  %241 = vst [vmem:[%s5 + $0x18] sm:$0xff] %v237
  // Predicated region
  $region22: #{resnet_conv_block.2} parent=0 // pred_check
    _
  $region23: #{resnet_conv_block.2} parent=0 // pred_check_branch
    %243 = sbr.rel (0) target = $region25
  $region24: #{resnet_conv_block.2} parent=0 // pred_region
    _
  $region25: #{resnet_conv_block.2} parent=0 // pred_fallthru
    _
  // Predicated region
  $region26: #{resnet_conv_block.2} parent=0 // pred_check
    _
  $region27: #{resnet_conv_block.2} parent=0 // pred_check_branch
    %245 = sbr.rel (0) target = $region29
  $region28: #{resnet_conv_block.2} parent=0 // pred_region
    _
  $region29: #{resnet_conv_block.2} parent=0 // pred_fallthru
    _

// kernel: resnet_conv_block.3
$region0: #{resnet_conv_block.3}
  #allocation0 [shape = 'u32[]', space=smem, size = 0x4, offset = 0x4, fixed_abs, tag = 'smem constant byte address 0x4 - core index']
  #allocation1 [shape = 'u32[144,128]{1,0:T(1,128)}', space=vmem, size = 0x12000, scoped, tag = 'internal scratch']
  %s0 = inlined_call_operand.vmem [shape: bf16[8,72], index: 0, kind: input, shape index: {}]
  %s1 = inlined_call_operand.vmem [shape: bf16[72,512], index: 1, kind: input, shape index: {}]
  %s2 = inlined_call_operand.vmem [shape: f32[8,1], index: 2, kind: input, shape index: {}]
  %s3 = inlined_call_operand.vmem [shape: f32[8,1], index: 3, kind: input, shape index: {}]
  %s4 = inlined_call_operand.vmem [shape: f32[8,1], index: 4, kind: input, shape index: {}]
  %s5 = inlined_call_operand.vmem [shape: bf16[8,4], index: 5, kind: input, shape index: {}]
  %s6 = inlined_call_operand.vmem [shape: bf16[4,512], index: 6, kind: input, shape index: {}]
  %s7 = inlined_call_operand.vmem [shape: f32[8,1], index: 7, kind: input, shape index: {}]
  %s8 = inlined_call_operand.vmem [shape: f32[8,512], index: 8, kind: output, shape index: {}]
  %s9 = sld [smem:[#allocation0]]
  $region42: #{resnet_conv_block.3} parent=0
    _
  %s11 = ssub.s32 1, %s9
  %s12 = scalar_select 0, %s11, %s9
  // Predicated region
  $region2: #{resnet_conv_block.3} parent=0 // pred_check
    _
  $region3: #{resnet_conv_block.3} parent=0 // pred_check_branch
    %14 = sbr.rel (0) target = $region5
  $region4: #{resnet_conv_block.3} parent=0 // pred_region
    _
  $region5: #{resnet_conv_block.3} parent=0 // pred_fallthru
    _
  // Predicated region
  $region6: #{resnet_conv_block.3} parent=0 // pred_check
    _
  $region7: #{resnet_conv_block.3} parent=0 // pred_check_branch
    %16 = sbr.rel (0) target = $region9
  $region8: #{resnet_conv_block.3} parent=0 // pred_region
    _
  $region9: #{resnet_conv_block.3} parent=0 // pred_fallthru
    _
  // Predicated region
  $region10: #{resnet_conv_block.3} parent=0 // pred_check
    _
  $region11: #{resnet_conv_block.3} parent=0 // pred_check_branch
    %18 = sbr.rel (0) target = $region13
  $region12: #{resnet_conv_block.3} parent=0 // pred_region
    _
  $region13: #{resnet_conv_block.3} parent=0 // pred_fallthru
    _
  // Predicated region
  $region14: #{resnet_conv_block.3} parent=0 // pred_check
    _
  $region15: #{resnet_conv_block.3} parent=0 // pred_check_branch
    %20 = sbr.rel (0) target = $region17
  $region16: #{resnet_conv_block.3} parent=0 // pred_region
    _
  $region17: #{resnet_conv_block.3} parent=0 // pred_fallthru
    _
  // Predicated region
  $region18: #{resnet_conv_block.3} parent=0 // pred_check
    _
  $region19: #{resnet_conv_block.3} parent=0 // pred_check_branch
    %22 = sbr.rel (0) target = $region21
  $region20: #{resnet_conv_block.3} parent=0 // pred_region
    _
  $region21: #{resnet_conv_block.3} parent=0 // pred_fallthru
    _
  // Predicated region
  $region22: #{resnet_conv_block.3} parent=0 // pred_check
    _
  $region23: #{resnet_conv_block.3} parent=0 // pred_check_branch
    %24 = sbr.rel (0) target = $region25
  $region24: #{resnet_conv_block.3} parent=0 // pred_region
    _
  $region25: #{resnet_conv_block.3} parent=0 // pred_fallthru
    _
  // Predicated region
  $region26: #{resnet_conv_block.3} parent=0 // pred_check
    _
  $region27: #{resnet_conv_block.3} parent=0 // pred_check_branch
    %26 = sbr.rel (0) target = $region29
  $region28: #{resnet_conv_block.3} parent=0 // pred_region
    _
  $region29: #{resnet_conv_block.3} parent=0 // pred_fallthru
    _
  // Predicated region
  $region30: #{resnet_conv_block.3} parent=0 // pred_check
    _
  $region31: #{resnet_conv_block.3} parent=0 // pred_check_branch
    %28 = sbr.rel (0) target = $region33
  $region32: #{resnet_conv_block.3} parent=0 // pred_region
    _
  $region33: #{resnet_conv_block.3} parent=0 // pred_fallthru
    _
  %v30 = vld [vmem:[%s0] sm:$0xf]
  %v31 = vld [vmem:[%s1] sm:$0xff]
  %v32 = vld [vmem:[%s1 + $0x8] sm:$0xff]
  %v33 = vld [vmem:[%s1 + $0x10] sm:$0xff]
  %v34 = vld [vmem:[%s1 + $0x18] sm:$0xff]
  %v35 = vld [vmem:[%s1 + $0x20] sm:$0xff]
  %v36 = vld [vmem:[%s1 + $0x28] sm:$0xff]
  %v37 = vld [vmem:[%s1 + $0x30] sm:$0xff]
  %v38 = vld [vmem:[%s1 + $0x38] sm:$0xff]
  %v39 = vld [vmem:[%s1 + $0x40] sm:$0xff]
  %v40 = vld [vmem:[%s1 + $0x48] sm:$0xff]
  %v41 = vld [vmem:[%s1 + $0x50] sm:$0xff]
  %v42 = vld [vmem:[%s1 + $0x58] sm:$0xff]
  %v43 = vld [vmem:[%s1 + $0x60] sm:$0xff]
  %v44 = vld [vmem:[%s1 + $0x68] sm:$0xff]
  %v45 = vld [vmem:[%s1 + $0x70] sm:$0xff]
  %v46 = vld [vmem:[%s1 + $0x78] sm:$0xff]
  %v47 = vld [vmem:[%s1 + $0x80] sm:$0xff]
  %v48 = vld [vmem:[%s1 + $0x88] sm:$0xff]
  %v49 = vld [vmem:[%s2] sm:$0xff]
  %51 = vset.pattern.permute.xlu0 0
  %52 = vperm.xlu0 %51, %v49
  %v53 = vpop.permute.xlu0 %52
  %v73 = vunpack.c.l.b16 %v31
  %v74 = vunpack.c.h.b16 %v31
  %v75 = vunpack.c.l.b16 %v32
  %v76 = vunpack.c.h.b16 %v32
  %v77 = vunpack.c.l.b16 %v33
  %v78 = vunpack.c.h.b16 %v33
  %v79 = vunpack.c.l.b16 %v34
  %v80 = vunpack.c.h.b16 %v34
  %v81 = vunpack.c.l.b16 %v35
  %v82 = vunpack.c.h.b16 %v35
  %v83 = vunpack.c.l.b16 %v36
  %v84 = vunpack.c.h.b16 %v36
  %v85 = vunpack.c.l.b16 %v37
  %v86 = vunpack.c.h.b16 %v37
  %v87 = vunpack.c.l.b16 %v38
  %v88 = vunpack.c.h.b16 %v38
  %v89 = vunpack.c.l.b16 %v39
  %v90 = vunpack.c.h.b16 %v39
  %v91 = vunpack.c.l.b16 %v40
  %v92 = vunpack.c.h.b16 %v40
  %v93 = vunpack.c.l.b16 %v41
  %v94 = vunpack.c.h.b16 %v41
  %v95 = vunpack.c.l.b16 %v42
  %v96 = vunpack.c.h.b16 %v42
  %v97 = vunpack.c.l.b16 %v43
  %v98 = vunpack.c.h.b16 %v43
  %v99 = vunpack.c.l.b16 %v44
  %v100 = vunpack.c.h.b16 %v44
  %v101 = vunpack.c.l.b16 %v45
  %v102 = vunpack.c.h.b16 %v45
  %v103 = vunpack.c.l.b16 %v46
  %v104 = vunpack.c.h.b16 %v46
  %v105 = vunpack.c.l.b16 %v47
  %v106 = vunpack.c.h.b16 %v47
  %v107 = vunpack.c.l.b16 %v48
  %v108 = vunpack.c.h.b16 %v48
  %v109 = vpack.c.b16 %v77, %v73
  %v110 = vpack.c.b16 %v78, %v74
  %v111 = vpack.c.b16 %v79, %v75
  %v112 = vpack.c.b16 %v80, %v76
  %v113 = vpack.c.b16 %v85, %v81
  %v114 = vpack.c.b16 %v86, %v82
  %v115 = vpack.c.b16 %v87, %v83
  %v116 = vpack.c.b16 %v88, %v84
  %v117 = vpack.c.b16 %v93, %v89
  %v118 = vpack.c.b16 %v94, %v90
  %v119 = vpack.c.b16 %v95, %v91
  %v120 = vpack.c.b16 %v96, %v92
  %v121 = vpack.c.b16 %v101, %v97
  %v122 = vpack.c.b16 %v102, %v98
  %v123 = vpack.c.b16 %v103, %v99
  %v124 = vpack.c.b16 %v104, %v100
  %v125 = vpack.c.b16 %v105, %v105
  %v126 = vpack.c.b16 %v106, %v106
  %v127 = vpack.c.b16 %v107, %v107
  %v128 = vpack.c.b16 %v108, %v108
  %vm145 = vcmask 588800
  %v147 = vsel %vm145, %v30, 0
  %vm149 = vcmask 1043456
  %v151 = vsel %vm149, %v125, 0
  %v154 = vsel %vm149, %v126, 0
  %v157 = vsel %vm149, %v127, 0
  %v160 = vsel %vm149, %v128, 0
  %162 = vmatprep.subr.bf16.mxu0 0
  %163 = vmatpush1.bf16.msra.mxu0 0
  %164 = vmatprep.subr.bf16.mxu0 0
  %165 = vmatpush1.bf16.msra.mxu0 0
  %166 = vmatprep.subr.bf16.mxu0 0
  %167 = vmatpush1.bf16.msra.mxu0 0
  %168 = vmatprep.subr.bf16.mxu0 %v154
  %169 = vmatpush1.bf16.msra.mxu0 %v151
  %170 = vmatprep.subr.bf16.mxu0 %v122
  %171 = vmatpush1.bf16.msra.mxu0 %v121
  %172 = vmatprep.subr.bf16.mxu0 %v118
  %173 = vmatpush1.bf16.msra.mxu0 %v117
  %174 = vmatprep.subr.bf16.mxu0 %v114
  %175 = vmatpush1.bf16.msra.mxu0 %v113
  %176 = vmatprep.subr.bf16.mxu0 %v110
  %177 = vmatpush1.bf16.msra.mxu0 %v109
  %178 = vmatprep.subr.bf16.mxu0 0
  %179 = vmatpush2.bf16.msra.mxu0 0
  %180 = vmatprep.subr.bf16.mxu0 0
  %181 = vmatpush2.bf16.msra.mxu0 0
  %182 = vmatprep.subr.bf16.mxu0 0
  %183 = vmatpush2.bf16.msra.mxu0 0
  %184 = vmatprep.subr.bf16.mxu0 0
  %185 = vmatpush2.bf16.msra.mxu0 0
  %186 = vmatprep.subr.bf16.mxu0 0
  %187 = vmatpush2.bf16.msra.mxu0 0
  %188 = vmatprep.subr.bf16.mxu0 0
  %189 = vmatpush2.bf16.msra.mxu0 0
  %190 = vmatprep.subr.bf16.mxu0 0
  %191 = vmatpush2.bf16.msra.mxu0 0
  %192 = vmatprep.subr.bf16.mxu0 0
  %193 = vmatpush2.bf16.msra.mxu0 0
  %194 = vmatprep.mubr.bf16.mxu0 0
  %195 = vmatmul.mubr.bf16.gmra.mxu0 %v147
  %v196 = vpop.f32.mrf.mxu0
  %v197 = vadd.f32 %v53, %v196
  %v198 = vpop.f32.mrf.mxu0
  %v199 = vadd.f32 %v53, %v198
  %v200 = vpop.f32.mrf.mxu0
  %v201 = vpop.f32.mrf.mxu0
  %202 = vdwg.mxu0
  %203 = vmatprep.subr.bf16.mxu0 0
  %204 = vmatpush1.bf16.msra.mxu0 0
  %205 = vmatprep.subr.bf16.mxu0 0
  %206 = vmatpush1.bf16.msra.mxu0 0
  %207 = vmatprep.subr.bf16.mxu0 0
  %208 = vmatpush1.bf16.msra.mxu0 0
  %209 = vmatprep.subr.bf16.mxu0 %v160
  %210 = vmatpush1.bf16.msra.mxu0 %v157
  %211 = vmatprep.subr.bf16.mxu0 %v124
  %212 = vmatpush1.bf16.msra.mxu0 %v123
  %213 = vmatprep.subr.bf16.mxu0 %v120
  %214 = vmatpush1.bf16.msra.mxu0 %v119
  %215 = vmatprep.subr.bf16.mxu0 %v116
  %216 = vmatpush1.bf16.msra.mxu0 %v115
  %217 = vmatprep.subr.bf16.mxu0 %v112
  %218 = vmatpush1.bf16.msra.mxu0 %v111
  %219 = vmatprep.subr.bf16.mxu0 0
  %220 = vmatpush2.bf16.msra.mxu0 0
  %221 = vmatprep.subr.bf16.mxu0 0
  %222 = vmatpush2.bf16.msra.mxu0 0
  %223 = vmatprep.subr.bf16.mxu0 0
  %224 = vmatpush2.bf16.msra.mxu0 0
  %225 = vmatprep.subr.bf16.mxu0 0
  %226 = vmatpush2.bf16.msra.mxu0 0
  %227 = vmatprep.subr.bf16.mxu0 0
  %228 = vmatpush2.bf16.msra.mxu0 0
  %229 = vmatprep.subr.bf16.mxu0 0
  %230 = vmatpush2.bf16.msra.mxu0 0
  %231 = vmatprep.subr.bf16.mxu0 0
  %232 = vmatpush2.bf16.msra.mxu0 0
  %233 = vmatprep.subr.bf16.mxu0 0
  %234 = vmatpush2.bf16.msra.mxu0 0
  %235 = vmatprep.mubr.bf16.mxu0 0
  %236 = vmatmul.mubr.bf16.gmra.mxu0 %v147
  %v237 = vpop.f32.mrf.mxu0
  %v238 = vadd.f32 %v53, %v237
  %v239 = vpop.f32.mrf.mxu0
  %v240 = vadd.f32 %v53, %v239
  %v241 = vpop.f32.mrf.mxu0
  %v242 = vpop.f32.mrf.mxu0
  %243 = vdwg.mxu0
  %v244 = vadd.f32 %v197, %v199
  %v245 = vadd.f32 %v244, %v238
  %v246 = vadd.f32 %v245, %v240
  %247 = vadd.xlane.f32.xlu0 %v246
  %v248 = vpop.xlane.xlu0 %247
  %v249 = vrcp.pop 512.0
  %v250 = vmul.f32 %v248, %v249
  %v251 = vsub.f32 %v197, %v250
  %v252 = vsub.f32 %v199, %v250
  %v253 = vsub.f32 %v238, %v250
  %v254 = vsub.f32 %v240, %v250
  %v255 = vmul.f32 %v251, %v251
  %v256 = vmul.f32 %v252, %v252
  %v257 = vmul.f32 %v253, %v253
  %v258 = vmul.f32 %v254, %v254
  %v259 = vadd.f32 %v255, %v256
  %v260 = vadd.f32 %v259, %v257
  %v261 = vadd.f32 %v260, %v258
  %262 = vadd.xlane.f32.xlu0 %v261
  %v263 = vpop.xlane.xlu0 %262
  %v264 = vmul.f32 %v263, %v249
  %v265 = vld [vmem:[%s3] sm:$0xff]
  %v266 = vadd.f32 %v264, 1e-05
  %v267 = vrsqrt.pop %v266
  %v268 = vmul.f32 %v251, %v267
  %v269 = vmul.f32 %v252, %v267
  %v270 = vmul.f32 %v253, %v267
  %v271 = vmul.f32 %v254, %v267
  %273 = vset.pattern.permute.xlu0 0
  %274 = vperm.xlu0 %273, %v265
  %v275 = vpop.permute.xlu0 %274
  %v277 = vmul.f32 %v275, %v268
  %v278 = vmul.f32 %v275, %v269
  %v279 = vmul.f32 %v275, %v270
  %v280 = vmul.f32 %v275, %v271
  %v281 = vld [vmem:[%s4] sm:$0xff]
  %283 = vset.pattern.permute.xlu0 0
  %284 = vperm.xlu0 %283, %v281
  %v285 = vpop.permute.xlu0 %284
  %v287 = vadd.f32 %v277, %v285
  %v288 = vadd.f32 %v278, %v285
  %v289 = vadd.f32 %v279, %v285
  %v290 = vadd.f32 %v280, %v285
  %v291 = vld [vmem:[%s5] sm:$0xf]
  %v292 = vld [vmem:[%s6] sm:$0xff]
  %v293 = vld [vmem:[%s7] sm:$0xff]
  %295 = vset.pattern.permute.xlu0 0
  %296 = vperm.xlu0 %295, %v293
  %v297 = vpop.permute.xlu0 %296
  %v300 = vcombine.high %v292, %v292
  %v302 = vunpack.c.l.s4 1983009808
  %v303 = vunpack.c.0.s8 %v302
  %v304 = vlaneseq
  %v305 = vshrl.u32 %v304, 7
  %v306 = vsub.s32 %v303, %v305
  %v307 = vrot.slane %v292, %v306
  %v309 = vunpack.c.l.s4 1983009808
  %v310 = vunpack.c.0.s8 %v309
  %v311 = vlaneseq
  %v312 = vshrl.u32 %v311, 7
  %v313 = vsub.s32 %v310, %v312
  %v314 = vrot.slane %v300, %v313
  %v315 = vcombine.high %v307, %v307
  %v316 = vcombine.high %v314, %v314
  %vm317 = vcmask 31744
  %v319 = vsel %vm317, %v291, 0
  %vm321 = vcmask 1041408
  %v323 = vsel %vm321, %v307, 0
  %v326 = vsel %vm321, %v315, 0
  %v329 = vsel %vm321, %v314, 0
  %v332 = vsel %vm321, %v316, 0
  %334 = vmatprep.subr.bf16.mxu0 0
  %335 = vmatpush1.bf16.msra.mxu0 0
  %336 = vmatprep.subr.bf16.mxu0 0
  %337 = vmatpush1.bf16.msra.mxu0 0
  %338 = vmatprep.subr.bf16.mxu0 0
  %339 = vmatpush1.bf16.msra.mxu0 0
  %340 = vmatprep.subr.bf16.mxu0 0
  %341 = vmatpush1.bf16.msra.mxu0 0
  %342 = vmatprep.subr.bf16.mxu0 0
  %343 = vmatpush1.bf16.msra.mxu0 0
  %344 = vmatprep.subr.bf16.mxu0 0
  %345 = vmatpush1.bf16.msra.mxu0 0
  %346 = vmatprep.subr.bf16.mxu0 0
  %347 = vmatpush1.bf16.msra.mxu0 0
  %348 = vmatprep.subr.bf16.mxu0 %v326
  %349 = vmatpush1.bf16.msra.mxu0 %v323
  %350 = vmatprep.subr.bf16.mxu0 0
  %351 = vmatpush2.bf16.msra.mxu0 0
  %352 = vmatprep.subr.bf16.mxu0 0
  %353 = vmatpush2.bf16.msra.mxu0 0
  %354 = vmatprep.subr.bf16.mxu0 0
  %355 = vmatpush2.bf16.msra.mxu0 0
  %356 = vmatprep.subr.bf16.mxu0 0
  %357 = vmatpush2.bf16.msra.mxu0 0
  %358 = vmatprep.subr.bf16.mxu0 0
  %359 = vmatpush2.bf16.msra.mxu0 0
  %360 = vmatprep.subr.bf16.mxu0 0
  %361 = vmatpush2.bf16.msra.mxu0 0
  %362 = vmatprep.subr.bf16.mxu0 0
  %363 = vmatpush2.bf16.msra.mxu0 0
  %364 = vmatprep.subr.bf16.mxu0 0
  %365 = vmatpush2.bf16.msra.mxu0 0
  %366 = vmatprep.mubr.bf16.mxu0 0
  %367 = vmatmul.mubr.bf16.gmra.mxu0 %v319
  %v368 = vpop.f32.mrf.mxu0
  %v369 = vadd.f32 %v297, %v368
  %v370 = vpop.f32.mrf.mxu0
  %v371 = vadd.f32 %v297, %v370
  %v372 = vpop.f32.mrf.mxu0
  %v373 = vpop.f32.mrf.mxu0
  %374 = vdwg.mxu0
  %375 = vmatprep.subr.bf16.mxu0 0
  %376 = vmatpush1.bf16.msra.mxu0 0
  %377 = vmatprep.subr.bf16.mxu0 0
  %378 = vmatpush1.bf16.msra.mxu0 0
  %379 = vmatprep.subr.bf16.mxu0 0
  %380 = vmatpush1.bf16.msra.mxu0 0
  %381 = vmatprep.subr.bf16.mxu0 0
  %382 = vmatpush1.bf16.msra.mxu0 0
  %383 = vmatprep.subr.bf16.mxu0 0
  %384 = vmatpush1.bf16.msra.mxu0 0
  %385 = vmatprep.subr.bf16.mxu0 0
  %386 = vmatpush1.bf16.msra.mxu0 0
  %387 = vmatprep.subr.bf16.mxu0 0
  %388 = vmatpush1.bf16.msra.mxu0 0
  %389 = vmatprep.subr.bf16.mxu0 %v332
  %390 = vmatpush1.bf16.msra.mxu0 %v329
  %391 = vmatprep.subr.bf16.mxu0 0
  %392 = vmatpush2.bf16.msra.mxu0 0
  %393 = vmatprep.subr.bf16.mxu0 0
  %394 = vmatpush2.bf16.msra.mxu0 0
  %395 = vmatprep.subr.bf16.mxu0 0
  %396 = vmatpush2.bf16.msra.mxu0 0
  %397 = vmatprep.subr.bf16.mxu0 0
  %398 = vmatpush2.bf16.msra.mxu0 0
  %399 = vmatprep.subr.bf16.mxu0 0
  %400 = vmatpush2.bf16.msra.mxu0 0
  %401 = vmatprep.subr.bf16.mxu0 0
  %402 = vmatpush2.bf16.msra.mxu0 0
  %403 = vmatprep.subr.bf16.mxu0 0
  %404 = vmatpush2.bf16.msra.mxu0 0
  %405 = vmatprep.subr.bf16.mxu0 0
  %406 = vmatpush2.bf16.msra.mxu0 0
  %407 = vmatprep.mubr.bf16.mxu0 0
  %408 = vmatmul.mubr.bf16.gmra.mxu0 %v319
  %v409 = vpop.f32.mrf.mxu0
  %v410 = vadd.f32 %v297, %v409
  %v411 = vpop.f32.mrf.mxu0
  %v412 = vadd.f32 %v297, %v411
  %v413 = vpop.f32.mrf.mxu0
  %v414 = vpop.f32.mrf.mxu0
  %415 = vdwg.mxu0
  %v416 = vadd.f32 %v287, %v369
  %v417 = vadd.f32 %v288, %v371
  %v418 = vadd.f32 %v289, %v410
  %v419 = vadd.f32 %v290, %v412
  %v420 = vmax.f32 %v416, 0.0
  %v421 = vmax.f32 %v417, 0.0
  %v422 = vmax.f32 %v418, 0.0
  %v423 = vmax.f32 %v419, 0.0
  %424 = vst [vmem:[%s8] sm:$0xff] %v420
  %425 = vst [vmem:[%s8 + $0x8] sm:$0xff] %v421
  %426 = vst [vmem:[%s8 + $0x10] sm:$0xff] %v422
  %427 = vst [vmem:[%s8 + $0x18] sm:$0xff] %v423
  // Predicated region
  $region34: #{resnet_conv_block.3} parent=0 // pred_check
    _
  $region35: #{resnet_conv_block.3} parent=0 // pred_check_branch
    %429 = sbr.rel (0) target = $region37
  $region36: #{resnet_conv_block.3} parent=0 // pred_region
    _
  $region37: #{resnet_conv_block.3} parent=0 // pred_fallthru
    _
  // Predicated region
  $region38: #{resnet_conv_block.3} parent=0 // pred_check
    _
  $region39: #{resnet_conv_block.3} parent=0 // pred_check_branch
    %431 = sbr.rel (0) target = $region41
  $region40: #{resnet_conv_block.3} parent=0 // pred_region
    _
  $region41: #{resnet_conv_block.3} parent=0 // pred_fallthru
    _

</llo_original>
